<compile_context>
chip_gen: v7x
topology: tpu7x:2x2x1
jax: 0.10.0
libtpu: 0.0.40
codegen_flags: <defaults>
</compile_context>

<pallas_src>
import re

import jax
import jax.numpy as jnp
from jax.experimental import pallas as pl
from jax.experimental.pallas import tpu as pltpu


def _throm_kernel(x_ref, t_ref, o_ref):
    # x_ref: (TN, TL) tile of the flattened input
    # t_ref: (TN, 1) per-row threshold  OR  (1, TL) per-lane threshold (both broadcast)
    # o_ref: (TN, TL) output tile
    o_ref[...] = jnp.maximum(x_ref[...] - t_ref[...], 0.0)


def _tpu_generation():
    try:
        kind = jax.devices()[0].device_kind
    except Exception:
        return 0
    m = re.search(r"(\d+)", kind)
    return int(m.group(1)) if m else 0


def _hw_params():
    """Return (target bytes per x/out block, vmem_limit_bytes or None)."""
    gen = _tpu_generation()
    if gen >= 7:
        # v7x: 64 MiB VMEM per TC, ~3.2 TB/s HBM -> 8 MiB blocks amortize the ~0.35 us
        # per-step overhead; 2x double-buffered (x + out) = 32 MiB, cap limit at 40 MiB.
        return 8 << 20, 40 << 20
    if gen >= 5:
        # v5e/v6e: 128 MiB physical VMEM; raise the scoped limit past the 16/32 MiB default.
        return 8 << 20, 64 << 20
    # Unknown / older chip: conservative, rely on the default scoped limit.
    return 2 << 20, None


def _pick_tiles(N, L, itemsize, block_bytes):
    """Row tile: multiple of the sublane packing (8 for 4-byte, 16 for 2-byte dtypes) or
    the full extent.  Column (lane) tile: multiple of 128 or the full extent.  Sized to
    ~block_bytes per x block, and split so the grid has >= 2 tiles when possible
    (megacore sharding on v7x)."""
    row_align = 8 if itemsize >= 4 else (16 if itemsize == 2 else 32)
    target_elems = max(block_bytes // itemsize, row_align * 128)

    TL = L if L <= 8192 else 8192  # 8192 is a multiple of 128; ragged edge is masked

    max_tn = max(row_align, target_elems // max(TL, 1))
    if N <= max_tn:
        TN = N
    else:
        TN = max((max_tn // row_align) * row_align, row_align)

    # Guarantee >= 2 tiles total so v7x can shard across its 2 TensorCores.
    if pl.cdiv(N, TN) * pl.cdiv(L, TL) < 2:
        if L >= 256 and L % 256 == 0:
            TL = L // 2                       # keep lane tile a multiple of 128
        else:
            half = -(-N // 2)                 # ceil(N/2), rounded up to row_align
            half = -(-half // row_align) * row_align
            if half < N:
                TN = half
    return TN, TL


def throm_pallas(x_nchw, thro):
    """ThroM forward: relu(x - thro), thro broadcast per channel.

    x_nchw: (B, C, H, W) float array (PyTorch layout).
    thro:   (1, C, 1, 1) or (C,) per-channel threshold.
    Returns (B, C, H, W), same dtype as x.
    """
    B, C, H, W = x_nchw.shape
    dtype = x_nchw.dtype
    itemsize = jnp.dtype(dtype).itemsize
    block_bytes, vmem_limit = _hw_params()

    # Threshold is cast to the activation dtype (matches the all-fp32 PyTorch module;
    # mixed bf16/fp32 promotion semantics would differ slightly and are intentional here).
    thro_c = jnp.reshape(thro, (C,)).astype(dtype)

    if (H * W) % 128 == 0:
        # Primary lane-dense path: (B*C, H*W) with one threshold value per row.
        N, L = B * C, H * W
        x2d = x_nchw.reshape(N, L)
        t2d = jnp.tile(thro_c, B).reshape(N, 1)
        per_row = True
    else:
        # Fallback for small feature maps (7x7, 14x14, ...): fold channels into the lane
        # axis so stores stay lane-dense; threshold becomes a per-lane row of length C*H*W.
        N, L = B, C * H * W
        x2d = x_nchw.reshape(N, L)
        t2d = jnp.repeat(thro_c, H * W).reshape(1, L)
        per_row = False

    TN, TL = _pick_tiles(N, L, itemsize, block_bytes)
    grid = (pl.cdiv(N, TN), pl.cdiv(L, TL))

    if per_row:
        # Block index depends only on i -> the threshold strip is not re-DMA'd while the
        # inner (column) axis sweeps.
        t_spec = pl.BlockSpec((TN, 1), lambda i, j: (i, 0))
    else:
        t_spec = pl.BlockSpec((1, TL), lambda i, j: (0, j))

    out2d = pl.pallas_call(
        _throm_kernel,
        out_shape=jax.ShapeDtypeStruct((N, L), dtype),
        grid=grid,
        in_specs=[
            pl.BlockSpec((TN, TL), lambda i, j: (i, j)),   # x tile
            t_spec,                                        # threshold
        ],
        out_specs=pl.BlockSpec((TN, TL), lambda i, j: (i, j)),
        compiler_params=pltpu.CompilerParams(
            dimension_semantics=("parallel", "parallel"),
            vmem_limit_bytes=vmem_limit),
    )(x2d, t2d)

    return out2d.reshape(B, C, H, W)


def _reference(x_nchw, thro):
    """Plain-JAX mirror of the PyTorch forward."""
    return jnp.maximum(x_nchw - jnp.reshape(thro, (1, -1, 1, 1)), 0.0)


if __name__ == "__main__":
    key = jax.random.PRNGKey(0)

    # Primary path: H*W = 256 is a multiple of 128.
    B, C, H, W = 2, 4, 16, 16
    x = jax.random.normal(key, (B, C, H, W), dtype=jnp.float32)
    thro = jnp.full((1, C, 1, 1), 0.5, dtype=jnp.float32)  # torch.full([1,num_M,1,1], 0.5)

    out = jax.block_until_ready(throm_pallas(x, thro))
    ref = jax.block_until_ready(_reference(x, thro))
    assert out.shape == (B, C, H, W)
    assert jnp.allclose(out, ref, rtol=1e-6, atol=1e-6), "mismatch vs JAX reference (primary)"

    # Fallback lane-dense path: H*W = 49 is NOT a multiple of 128.
    x2 = jax.random.normal(jax.random.PRNGKey(1), (2, 4, 7, 7), dtype=jnp.float32)
    out2 = jax.block_until_ready(throm_pallas(x2, thro))
    ref2 = jax.block_until_ready(_reference(x2, thro))
    assert jnp.allclose(out2, ref2, rtol=1e-6, atol=1e-6), "mismatch vs JAX reference (fallback)"

    print("KERNEL_OK")
</pallas_src>

<mosaic_0001>
module attributes {stable_mosaic.version = 11 : i64} {
  func.func @_throm_kernel(%arg0: i32, %arg1: i32, %arg2: memref<8x128xf32, #tpu.memory_space<vmem>>, %arg3: memref<8x1xf32, #tpu.memory_space<vmem>>, %arg4: memref<8x128xf32, #tpu.memory_space<vmem>>) attributes {dimension_semantics = [#tpu.dimension_semantics<parallel>, #tpu.dimension_semantics<parallel>], iteration_bounds = array<i64: 1, 2>, scalar_prefetch = 0 : i64, scratch_operands = 0 : i64, tpu.core_type = #tpu.core_type<tc>, window_params = [{transform_indices = @transform_0, window_bounds = array<i64: 8, 128>}, {transform_indices = @transform_1, window_bounds = array<i64: 8, 1>}, {transform_indices = @transform_2, window_bounds = array<i64: 8, 128>}]} {
    %c0 = arith.constant 0 : index
    %c0_0 = arith.constant 0 : index
    %0 = vector.load %arg2[%c0, %c0_0] : memref<8x128xf32, #tpu.memory_space<vmem>>, vector<8x128xf32>
    %c0_1 = arith.constant 0 : index
    %c0_2 = arith.constant 0 : index
    %1 = vector.load %arg3[%c0_1, %c0_2] : memref<8x1xf32, #tpu.memory_space<vmem>>, vector<8x1xf32>
    %2 = vector.broadcast %1 : vector<8x1xf32> to vector<8x128xf32>
    %3 = arith.subf %0, %2 : vector<8x128xf32>
    %cst = arith.constant 0.000000e+00 : f32
    %4 = vector.broadcast %cst : f32 to vector<8x128xf32>
    %5 = arith.maximumf %3, %4 : vector<8x128xf32>
    %c0_3 = arith.constant 0 : index
    %c0_4 = arith.constant 0 : index
    %6 = vector.load %arg4[%c0_3, %c0_4] : memref<8x128xf32, #tpu.memory_space<vmem>>, vector<8x128xf32>
    tpu.vector_store %arg4[%c0_3, %c0_4], %5 {strides = array<i32>} : memref<8x128xf32, #tpu.memory_space<vmem>>, vector<8x128xf32>,
    return
  }
  func.func @transform_0(%arg0: i32, %arg1: i32) -> (i32, i32) {
    %c0_i32 = arith.constant 0 : i32
    return %arg0, %arg1 : i32, i32
  }
  func.func @transform_1(%arg0: i32, %arg1: i32) -> (i32, i32) {
    %c0_i32 = arith.constant 0 : i32
    %c0_i32_0 = arith.constant 0 : i32
    return %arg0, %c0_i32 : i32, i32
  }
  func.func @transform_2(%arg0: i32, %arg1: i32) -> (i32, i32) {
    %c0_i32 = arith.constant 0 : i32
    return %arg0, %arg1 : i32, i32
  }
}

</mosaic_0001>

<llo_original>
// kernel: tpu_custom_call.1
$region0: #{tpu_custom_call.1}
  #allocation0 [shape = 'u32[]', space=smem, size = 0x4, offset = 0x4, fixed_abs, tag = 'smem constant byte address 0x4 - core index']
  #allocation1 [shape = 'u32[144,128]{1,0:T(1,128)}', space=vmem, size = 0x12000, scoped, tag = 'internal scratch']
  %s0 = inlined_call_operand.hbm [shape: f32[8,256], index: 0, kind: input, shape index: {}]
  %s1 = inlined_call_operand.vmem [shape: f32[8,1], index: 1, kind: input, shape index: {}]
  %s2 = inlined_call_operand.hbm [shape: f32[8,256], index: 2, kind: output, shape index: {}]
  %s3 = sld [smem:[#allocation0]]
  $region45: #{tpu_custom_call.1} parent=0
    _
  %s5 = ssub.s32 1, %s3
  %s6 = scalar_select 0, %s5, %s3
  $region1: #{tpu_custom_call.1} parent=0
    #allocation2 [shape = 'u8[8192]{0}', space=vmem, size = 0x2000, scoped, tag = 'input window, operand 0']
    #allocation3 [shape = 's32[2]{0}', space=sflag, size = 0x8, scoped, tag = 'scoped memory for tpu_custom_call.1']
    #allocation4 [shape = 's32[2]{0}', space=sflag, size = 0x8, scoped, tag = 'scoped memory for tpu_custom_call.1']
    #allocation5 [shape = 'u8[8192]{0}', space=vmem, size = 0x2000, scoped, tag = 'output window, operand 0']
    %7 = vsyncpa [#allocation3], 0
    %s8 = scalar_lea.sflag [#allocation3], 1
    %9 = vsyncpa %s8, 0
    %10 = vsyncpa [#allocation4], 0
    %s11 = scalar_lea.sflag [#allocation4], 1
    %12 = vsyncpa %s11, 0
    loop: start=0, step=1, limit=4
    $region2: #{tpu_custom_call.1} parent=1 // loop_pre_header
      _
    $region3: #{tpu_custom_call.1} parent=1 // loop_header
      %s14 = sphi 0, %s18
      %p15 = scmp.ge.s32.totalorder %s14, 4
      %s21 = sphi 0, %s33
      %s22 = sphi 0, %s29
      %s23 = sphi 0, %s21
      %s24 = sphi 0, %s22
      %s25 = sphi 0, %s23
      %s26 = sphi 0, %s24
      %s38 = sphi 0, %s40
      %s41 = sphi 0, %s38
      %s42 = sphi 0, %s41
      %s58 = sphi 0, %s42
      %s64 = sphi 0, %s66
      %s67 = sphi 0, %s64
      %s68 = sphi 0, %s67
      %s84 = sphi 0, %s68
      %s92 = sphi 0, %s94
      %s95 = sphi 0, %s92
      %s96 = sphi 0, %s95
      %s112 = sphi 0, %s96
    $region4: #{tpu_custom_call.1} parent=1 // loop_header_branch
      %17 = sbr.rel (%p15) target = $region8
    $region5: #{tpu_custom_call.1} parent=1 // loop_body
      %s19 = ssub.s32 %s14, 1
      %s20 = ssub.s32 %s14, 2
      %s27 = sadd.s32 1, %s22
      %p28 = scmp.ge.s32.totalorder %s27, 2
      %s29 = scalar_select %p28, 0, %s27
      %s30 = sadd.s32 1, %s21
      %s31 = scalar_select %p28, %s30, %s21
      %p32 = scmp.ge.s32.totalorder %s31, 1
      %s33 = scalar_select %p32, 0, %s31
      %s34 = ssub.s32 %s21, %s33
      %s35 = ssub.s32 %s22, %s29
      %s36 = sor.u32 %s34, %s35
      %p37 = scmp.eq.s32.totalorder %s36, 0
      %s39 = sadd.s32 %s38, 1
      %s40 = scalar_select %p37, %s38, %s39
      %p43 = pneg %p37
      %p44 = scmp.eq.s32.totalorder %s14, 1
      %p45 = por %p43, %p44
      %p46 = scmp.ne.s32.totalorder %s38, %s41
      %p47 = scmp.eq.s32.totalorder %s14, 0
      %p48 = por %p46, %p47
      %p49 = scmp.ne.s32.totalorder %s38, %s41
      %p50 = scmp.eq.s32.totalorder %s19, 1
      %p51 = por %p49, %p50
      %p52 = scmp.ne.s32.totalorder %s41, %s42
      %p53 = scmp.eq.s32.totalorder %s19, 0
      %p54 = por %p52, %p53
      %p55 = scmp.ne.s32.totalorder %s41, %s42
      %p56 = scmp.eq.s32.totalorder %s20, 1
      %p57 = por %p55, %p56
      %p59 = scmp.ne.s32.totalorder %s42, %s58
      %p60 = scmp.eq.s32.totalorder %s20, 0
      %p61 = por %p59, %p60
      %s62 = ssub.s32 %s21, %s33
      %p63 = scmp.eq.s32.totalorder %s62, 0
      %s65 = sadd.s32 %s64, 1
      %s66 = scalar_select %p63, %s64, %s65
      %p69 = pneg %p63
      %p70 = scmp.eq.s32.totalorder %s14, 1
      %p71 = por %p69, %p70
      %p72 = scmp.ne.s32.totalorder %s64, %s67
      %p73 = scmp.eq.s32.totalorder %s14, 0
      %p74 = por %p72, %p73
      %p75 = scmp.ne.s32.totalorder %s64, %s67
      %p76 = scmp.eq.s32.totalorder %s19, 1
      %p77 = por %p75, %p76
      %p78 = scmp.ne.s32.totalorder %s67, %s68
      %p79 = scmp.eq.s32.totalorder %s19, 0
      %p80 = por %p78, %p79
      %p81 = scmp.ne.s32.totalorder %s67, %s68
      %p82 = scmp.eq.s32.totalorder %s20, 1
      %p83 = por %p81, %p82
      %p85 = scmp.ne.s32.totalorder %s68, %s84
      %p86 = scmp.eq.s32.totalorder %s20, 0
      %p87 = por %p85, %p86
      %s88 = ssub.s32 %s21, %s33
      %s89 = ssub.s32 %s22, %s29
      %s90 = sor.u32 %s88, %s89
      %p91 = scmp.eq.s32.totalorder %s90, 0
      %s93 = sadd.s32 %s92, 1
      %s94 = scalar_select %p91, %s92, %s93
      %p97 = pneg %p91
      %p98 = scmp.eq.s32.totalorder %s14, 1
      %p99 = por %p97, %p98
      %p100 = scmp.ne.s32.totalorder %s92, %s95
      %p101 = scmp.eq.s32.totalorder %s14, 0
      %p102 = por %p100, %p101
      %p103 = scmp.ne.s32.totalorder %s92, %s95
      %p104 = scmp.eq.s32.totalorder %s19, 1
      %p105 = por %p103, %p104
      %p106 = scmp.ne.s32.totalorder %s95, %s96
      %p107 = scmp.eq.s32.totalorder %s19, 0
      %p108 = por %p106, %p107
      %p109 = scmp.ne.s32.totalorder %s95, %s96
      %p110 = scmp.eq.s32.totalorder %s20, 1
      %p111 = por %p109, %p110
      %p113 = scmp.ne.s32.totalorder %s96, %s112
      %p114 = scmp.eq.s32.totalorder %s20, 0
      %p115 = por %p113, %p114
      %p116 = scmp.le.s32.totalorder 1, %s14
      %p117 = scmp.lt.s32.totalorder %s14, 3
      %p118 = pnand %p116, %p117
      %p119 = pneg %p118
      // Predicated region
      $region9: #{tpu_custom_call.1} parent=5 // pred_check
        _
      $region10: #{tpu_custom_call.1} parent=5 // pred_check_branch
        %121 = sbr.rel (%p118) target = $region12
      $region11: #{tpu_custom_call.1} parent=5 // pred_region
        %s122 = ssub.s32 %s14, 1
        // Predicated region
        $region13: #{tpu_custom_call.1} parent=11 // pred_check
          %p123 = pneg %p80
        $region14: #{tpu_custom_call.1} parent=11 // pred_check_branch
          %125 = sbr.rel (%p123) target = $region16
        $region15: #{tpu_custom_call.1} parent=11 // pred_region
          %p126 = scmp.lt.s32.totalorder %s23, 0
          %s127 = scalar_select %p126, %s23, 0
          %s128 = smul.addr %s127, 8
          %s129 = scalar_lea.vmem %s1, %s128
        $region16: #{tpu_custom_call.1} parent=11 // pred_fallthru
          _
      $region12: #{tpu_custom_call.1} parent=5 // pred_fallthru
        _
      %p130 = scmp.lt.s32.totalorder %s14, 2
      // Predicated region
      $region17: #{tpu_custom_call.1} parent=5 // pred_check
        %p131 = pneg %p130
      $region18: #{tpu_custom_call.1} parent=5 // pred_check_branch
        %133 = sbr.rel (%p131) target = $region20
      $region19: #{tpu_custom_call.1} parent=5 // pred_region
        // Predicated region
        $region21: #{tpu_custom_call.1} parent=19 // pred_check
          %p134 = pneg %p48
        $region22: #{tpu_custom_call.1} parent=19 // pred_check_branch
          %136 = sbr.rel (%p134) target = $region24
        $region23: #{tpu_custom_call.1} parent=19 // pred_region
          %s137 = sand.u32 %s38, 1
          %s138 = scalar_lea.sflag [#allocation3], %s137
          %s139 = sand.u32 %s38, 1
          %s140 = smul.addr %s139, 8
          %s141 = scalar_lea.vmem [#allocation2], %s140
          %s143 = ssub.s32 128, 128
          %144 = vsyncadd %s138, %s143
          %s145 = smul.addr %s21, 2
          %s146 = sadd.s32 %s22, %s145
          %s147 = smul.addr %s146, 128
          %s148 = scalar_lea.hbm %s0, %s147
          %s150 = sshll.u32 %s141, 4
          %s151 = int_to_ptr.vmem [resolvable:$true] %s150
          %153 = dma.hbm_to_vmem [thread:$0]  %s148, 128, %s151, %s138
        $region24: #{tpu_custom_call.1} parent=19 // pred_fallthru
          _
      $region20: #{tpu_custom_call.1} parent=5 // pred_fallthru
        _
      %p154 = scmp.le.s32.totalorder 1, %s14
      %p155 = scmp.lt.s32.totalorder %s14, 3
      %p156 = pnand %p154, %p155
      %p157 = pneg %p156
      // Predicated region
      $region25: #{tpu_custom_call.1} parent=5 // pred_check
        _
      $region26: #{tpu_custom_call.1} parent=5 // pred_check_branch
        %159 = sbr.rel (%p156) target = $region28
      $region27: #{tpu_custom_call.1} parent=5 // pred_region
        %s160 = ssub.s32 %s14, 1
        %s161 = sand.u32 %s41, 1
        %s162 = scalar_lea.sflag [#allocation3], %s161
        %s163 = sand.u32 %s41, 1
        %s164 = smul.addr %s163, 8
        %s165 = scalar_lea.vmem [#allocation2], %s164
        // Predicated region
        $region29: #{tpu_custom_call.1} parent=27 // pred_check
          %p166 = pneg %p54
        $region30: #{tpu_custom_call.1} parent=27 // pred_check_branch
          %168 = sbr.rel (%p166) target = $region32
        $region31: #{tpu_custom_call.1} parent=27 // pred_region
          %169 = dma.done %s162, 128
        $region32: #{tpu_custom_call.1} parent=27 // pred_fallthru
          _
        %s170 = sand.u32 %s41, 1
        %s171 = scalar_lea.sflag [#allocation3], %s170
        %s172 = sand.u32 %s41, 1
        %s173 = smul.addr %s172, 8
        %s174 = scalar_lea.vmem [#allocation2], %s173
        %p175 = pneg %p54
        %p176 = pneg %p51
        %p177 = scmp.lt.s32.totalorder %s23, 0
        %s178 = scalar_select %p177, %s23, 0
        %s179 = smul.addr %s178, 8
        %s180 = scalar_lea.vmem %s1, %s179
        %p181 = pneg %p80
        %p182 = pneg %p77
        %p183 = pneg %p108
        %p184 = pneg %p105
        %s185 = sand.u32 %s95, 1
        %s186 = scalar_lea.sflag [#allocation4], %s185
        %s187 = sand.u32 %s95, 1
        %s188 = smul.addr %s187, 8
        %s189 = scalar_lea.vmem [#allocation5], %s188
        %p190 = scmp.lt.s32.totalorder %s23, 0
        %s191 = scalar_select %p190, %s23, 0
        %s192 = smul.addr %s191, 8
        %s193 = scalar_lea.vmem %s1, %s192
        %v194 = vld [vmem:[%s165] sm:$0xff]
        %v195 = vld [vmem:[%s193] sm:$0xff]
        %197 = vset.pattern.permute.xlu0 0
        %198 = vperm.xlu0 %197, %v195
        %v199 = vpop.permute.xlu0 %198
        %v201 = vsub.f32 %v194, %v199
        %v202 = vmax.f32 %v201, 0.0
        %203 = vst [vmem:[%s189] sm:$0xff] %v202
        %s204 = sand.u32 %s95, 1
        %s205 = scalar_lea.sflag [#allocation4], %s204
        %s206 = sand.u32 %s95, 1
        %s207 = smul.addr %s206, 8
        %s208 = scalar_lea.vmem [#allocation5], %s207
        // Predicated region
        $region33: #{tpu_custom_call.1} parent=27 // pred_check
          %p209 = pneg %p105
        $region34: #{tpu_custom_call.1} parent=27 // pred_check_branch
          %211 = sbr.rel (%p209) target = $region36
        $region35: #{tpu_custom_call.1} parent=27 // pred_region
          %s213 = ssub.s32 128, 128
          %214 = vsyncadd %s205, %s213
          %s215 = smul.addr %s23, 2
          %s216 = sadd.s32 %s24, %s215
          %s217 = smul.addr %s216, 128
          %s218 = scalar_lea.hbm %s2, %s217
          %s220 = sshll.u32 %s208, 4
          %s221 = int_to_ptr.vmem [resolvable:$true] %s220
          %223 = dma.vmem_to_hbm [thread:$0]  %s221, 128, %s218, %s205
        $region36: #{tpu_custom_call.1} parent=27 // pred_fallthru
          _
      $region28: #{tpu_custom_call.1} parent=5 // pred_fallthru
        _
      %p224 = scmp.le.s32.totalorder 2, %s14
      // Predicated region
      $region37: #{tpu_custom_call.1} parent=5 // pred_check
        %p225 = pneg %p224
      $region38: #{tpu_custom_call.1} parent=5 // pred_check_branch
        %227 = sbr.rel (%p225) target = $region40
      $region39: #{tpu_custom_call.1} parent=5 // pred_region
        %s228 = ssub.s32 %s14, 2
        // Predicated region
        $region41: #{tpu_custom_call.1} parent=39 // pred_check
          %p229 = pneg %p111
        $region42: #{tpu_custom_call.1} parent=39 // pred_check_branch
          %231 = sbr.rel (%p229) target = $region44
        $region43: #{tpu_custom_call.1} parent=39 // pred_region
          %s232 = sand.u32 %s96, 1
          %s233 = scalar_lea.sflag [#allocation4], %s232
          %s234 = sand.u32 %s96, 1
          %s235 = smul.addr %s234, 8
          %s236 = scalar_lea.vmem [#allocation5], %s235
          %237 = dma.done %s233, 128
        $region44: #{tpu_custom_call.1} parent=39 // pred_fallthru
          _
      $region40: #{tpu_custom_call.1} parent=5 // pred_fallthru
        _
    $region6: #{tpu_custom_call.1} parent=1 // loop_footer
      %s18 = sadd.s32 1, %s14
    $region7: #{tpu_custom_call.1} parent=1 // loop_footer_branch
      %13 = sbr.rel target = $region3
    $region8: #{tpu_custom_call.1} parent=1 // loop_exit
      _
    %238 = vsyncpa [#allocation3], 1
    %s239 = scalar_lea.sflag [#allocation3], 1
    %240 = vsyncpa %s239, 1
    %241 = vsyncpa [#allocation4], 1
    %s242 = scalar_lea.sflag [#allocation4], 1
    %243 = vsyncpa %s242, 1

</llo_original>
